<compile_context>
chip_gen: v7x
topology: tpu7x:2x2x1
jax: 0.10.0
libtpu: 0.0.40
codegen_flags: <defaults>
</compile_context>

<pallas_src>
import jax
import jax.numpy as jnp
from jax.experimental import pallas as pl
from jax.experimental.pallas import tpu as pltpu


# ---------------------------------------------------------------------------
# VMEM sizing helpers (padding-aware, generation-aware).
# ---------------------------------------------------------------------------
def _round_up(x, m):
    return ((x + m - 1) // m) * m


def _sublanes(dtype):
    # Sub-32-bit dtypes pack along sublanes: bf16 -> 16, int8/fp8 -> 32.
    return max(8, 32 // jnp.dtype(dtype).itemsize)


def _block_bytes(rows, cols, dtype):
    """Physical VMEM footprint of a (rows, cols) block after (sublane, 128) padding."""
    it = jnp.dtype(dtype).itemsize
    return _round_up(max(rows, 1), _sublanes(dtype)) * _round_up(max(cols, 1), 128) * it


def _vmem_budget_bytes():
    """~60% of per-TensorCore VMEM: ~76 MiB on v5e/v6e, ~38 MiB on v7x."""
    cap = None
    try:
        cap = pltpu.get_tpu_info().vmem_capacity_bytes
    except Exception:
        cap = None
    if not cap:
        cap = 64 * 1024 * 1024  # conservative per-TC default (v7x-sized)
    return max(16 * 1024 * 1024, int(cap * 0.6))


def _choose_tiles(bt, h, x_dtype, w_dtype, o_dtype, budget):
    """Pick (tm, tn, weight_single_buffered) against padded VMEM footprints."""
    slack = 2 * 1024 * 1024

    def fits(tm, tn, w_bufs):
        # Weight slabs W1t, W2t (H, tn) + bias (1, tn), w_bufs-buffered;
        # streamed x1, x2 (tm, H) and out (tm, tn) are double-buffered.
        w = w_bufs * (2 * _block_bytes(h, tn, w_dtype) + _block_bytes(1, tn, w_dtype))
        a = 2 * (2 * _block_bytes(tm, h, x_dtype) + _block_bytes(tm, tn, o_dtype))
        return w + a + slack <= budget

    def max_tm(tn, w_bufs):
        tm = 1024
        while tm > 8 and not fits(tm, tn, w_bufs):
            tm //= 2
        return tm if fits(tm, tn, w_bufs) else 0

    # Preferred: full-H resident weight slabs, single-buffered (never change).
    candidates = [(h, 1)]
    # Fallback for large H: tile output channels with 128/256-aligned slabs
    # (streamed, double-buffered) so row tiles stay large.
    candidates += [(tn, 2) for tn in (512, 256, 128) if tn < h]

    tm, tn, w_bufs = 0, h, 1
    for cand_tn, cand_bufs in candidates:
        t = max_tm(cand_tn, cand_bufs)
        if t >= 512:
            tm, tn, w_bufs = t, cand_tn, cand_bufs
            break
        if t > tm:
            tm, tn, w_bufs = t, cand_tn, cand_bufs
    if tm == 0:
        # TODO(synk): add K-tiling over the contraction dim (f32 VMEM
        # accumulator + "arbitrary" axis) for H so large that even an
        # (8, H) x (H, 128) step overflows VMEM.
        tm, tn, w_bufs = 8, min(h, 128), 2

    # Keep ~8+ row tiles so DMA/compute/writeback overlap and both v7x
    # TensorCores get work — unless BT is genuinely tiny.
    if bt > 64:
        tm = min(tm, max(8, ((bt // 8) // 8) * 8))
    # Never use a block taller than the (8-rounded) row count.
    tm = max(8, min(tm, _round_up(bt, 8)))
    return tm, tn, w_bufs == 1


def _maybe_single_buffered_spec(shape, index_map, single):
    """BlockSpec for a grid-invariant block; single-buffer it when supported."""
    if single:
        try:
            return pl.BlockSpec(shape, index_map, pipeline_mode=pl.Buffered(1))
        except Exception:  # very old jax without pipeline_mode -> default (2)
            pass
    return pl.BlockSpec(shape, index_map)


# ---------------------------------------------------------------------------
# Kernel.
# ---------------------------------------------------------------------------
def _concat_op_kernel(x1_ref, x2_ref, w1_ref, w2_ref, b_ref, out_ref):
    """out = x1 @ W1t + x2 @ W2t + bias, f32 accumulation on the MXU."""
    acc = jnp.dot(x1_ref[...], w1_ref[...], preferred_element_type=jnp.float32)
    acc = acc + jnp.dot(x2_ref[...], w2_ref[...], preferred_element_type=jnp.float32)
    acc = acc + b_ref[...].astype(jnp.float32)  # (1, tn) broadcasts over rows
    out_ref[...] = acc.astype(out_ref.dtype)


def concat_op_forward(in1, in2, weight, bias):
    """Pallas equivalent of ConcatOp.forward.

    in1, in2 : (B, T, H)
    weight   : (H, 2H)   -- Conv1d weight with the trailing k=1 dim squeezed
    bias     : (H,)
    returns  : (B, T, H)
    """
    B, T, H = in1.shape
    assert in2.shape == (B, T, H)
    assert weight.shape == (H, 2 * H)
    assert bias.shape == (H,)
    BT = B * T

    x1 = in1.reshape(BT, H)
    x2 = in2.reshape(BT, H)
    # One-time wrapper-side split + transpose of the invariant Conv1d weight:
    #   y[m, o] = sum_e x1[m, e] * W[o, e] + sum_e x2[m, e] * W[o, H + e] + b[o]
    w1t = weight[:, :H].T  # (H, H)
    w2t = weight[:, H:].T  # (H, H)
    b2d = bias.reshape(1, H)

    budget = _vmem_budget_bytes()
    tm, tn, w_single = _choose_tiles(BT, H, x1.dtype, weight.dtype, in1.dtype, budget)

    # N-tiles outer, M-tiles inner -> each weight slab is fetched once and
    # reused across all row tiles of that slab.
    grid = (pl.cdiv(H, tn), pl.cdiv(BT, tm))

    in_specs = [
        pl.BlockSpec((tm, H), lambda j, i: (i, 0)),                   # x1 rows (streamed)
        pl.BlockSpec((tm, H), lambda j, i: (i, 0)),                   # x2 rows (streamed)
        _maybe_single_buffered_spec((H, tn), lambda j, i: (0, j), w_single),  # W1^T slab
        _maybe_single_buffered_spec((H, tn), lambda j, i: (0, j), w_single),  # W2^T slab
        _maybe_single_buffered_spec((1, tn), lambda j, i: (0, j), w_single),  # bias slab
    ]
    out_spec = pl.BlockSpec((tm, tn), lambda j, i: (i, j))

    out = pl.pallas_call(
        _concat_op_kernel,
        out_shape=jax.ShapeDtypeStruct((BT, H), in1.dtype),
        grid_spec=pl.GridSpec(grid=grid, in_specs=in_specs, out_specs=out_spec),
        compiler_params=pltpu.CompilerParams(
            dimension_semantics=("parallel", "parallel"),
            vmem_limit_bytes=budget,
        ),
    )(x1, x2, w1t, w2t, b2d)

    return out.reshape(B, T, H)


def _reference(in1, in2, weight, bias):
    # Pure-JAX reference mirroring the PyTorch module.
    cat = jnp.concatenate([in1, in2], axis=-1)             # (B, T, 2H)
    return jnp.einsum("bte,he->bth", cat, weight) + bias   # (B, T, H)


if __name__ == "__main__":
    key = jax.random.PRNGKey(0)
    B, T, H = 2, 8, 32  # batch, seq, hidden

    k1, k2, kw, kb = jax.random.split(key, 4)
    in1 = jax.random.normal(k1, (B, T, H), dtype=jnp.float32)
    in2 = jax.random.normal(k2, (B, T, H), dtype=jnp.float32)

    # Deterministic Conv1d(2H -> H, k=1) parameters (kaiming-uniform-like range).
    fan_in = 2 * H
    bound = 1.0 / (fan_in ** 0.5)
    weight = jax.random.uniform(kw, (H, 2 * H), minval=-bound, maxval=bound,
                                dtype=jnp.float32)
    bias = jax.random.uniform(kb, (H,), minval=-bound, maxval=bound,
                              dtype=jnp.float32)

    out = concat_op_forward(in1, in2, weight, bias)
    out = jax.block_until_ready(out)

    ref = _reference(in1, in2, weight, bias)
    assert out.shape == (B, T, H)
    assert jnp.allclose(out, ref, atol=1e-5, rtol=1e-5)

    print("KERNEL_OK")
</pallas_src>

<mosaic_0001>
module attributes {stable_mosaic.version = 11 : i64} {
  func.func @_concat_op_kernel(%arg0: i32, %arg1: i32, %arg2: memref<16x32xf32, #tpu.memory_space<vmem>>, %arg3: memref<16x32xf32, #tpu.memory_space<vmem>>, %arg4: memref<32x32xf32, #tpu.memory_space<vmem>>, %arg5: memref<32x32xf32, #tpu.memory_space<vmem>>, %arg6: memref<1x32xf32, #tpu.memory_space<vmem>>, %arg7: memref<16x32xf32, #tpu.memory_space<vmem>>) attributes {dimension_semantics = [#tpu.dimension_semantics<parallel>, #tpu.dimension_semantics<parallel>], iteration_bounds = array<i64: 1, 1>, scalar_prefetch = 0 : i64, scratch_operands = 0 : i64, tpu.core_type = #tpu.core_type<tc>, window_params = [{transform_indices = @transform_0, window_bounds = array<i64: 16, 32>}, {transform_indices = @transform_1, window_bounds = array<i64: 16, 32>}, {pipeline_mode = #tpu.pipeline_mode<synchronous>, transform_indices = @transform_2, window_bounds = array<i64: 32, 32>}, {pipeline_mode = #tpu.pipeline_mode<synchronous>, transform_indices = @transform_3, window_bounds = array<i64: 32, 32>}, {pipeline_mode = #tpu.pipeline_mode<synchronous>, transform_indices = @transform_4, window_bounds = array<i64: 1, 32>}, {transform_indices = @transform_5, window_bounds = array<i64: 16, 32>}]} {
    %c0 = arith.constant 0 : index
    %c0_0 = arith.constant 0 : index
    %0 = vector.load %arg2[%c0, %c0_0] : memref<16x32xf32, #tpu.memory_space<vmem>>, vector<16x32xf32>
    %c0_1 = arith.constant 0 : index
    %c0_2 = arith.constant 0 : index
    %1 = vector.load %arg4[%c0_1, %c0_2] : memref<32x32xf32, #tpu.memory_space<vmem>>, vector<32x32xf32>
    %cst = arith.constant dense<0.000000e+00> : vector<16x32xf32>
    %2 = tpu.matmul %0, %1, %cst {dimension_numbers = #tpu.dot_dimension_numbers<[1], [0], [0], [1], [0, 0, 1, 1], [], []>} : vector<16x32xf32>, vector<32x32xf32>, vector<16x32xf32> -> vector<16x32xf32>
    %c0_3 = arith.constant 0 : index
    %c0_4 = arith.constant 0 : index
    %3 = vector.load %arg3[%c0_3, %c0_4] : memref<16x32xf32, #tpu.memory_space<vmem>>, vector<16x32xf32>
    %c0_5 = arith.constant 0 : index
    %c0_6 = arith.constant 0 : index
    %4 = vector.load %arg5[%c0_5, %c0_6] : memref<32x32xf32, #tpu.memory_space<vmem>>, vector<32x32xf32>
    %cst_7 = arith.constant dense<0.000000e+00> : vector<16x32xf32>
    %5 = tpu.matmul %3, %4, %cst_7 {dimension_numbers = #tpu.dot_dimension_numbers<[1], [0], [0], [1], [0, 0, 1, 1], [], []>} : vector<16x32xf32>, vector<32x32xf32>, vector<16x32xf32> -> vector<16x32xf32>
    %6 = arith.addf %2, %5 : vector<16x32xf32>
    %c0_8 = arith.constant 0 : index
    %c0_9 = arith.constant 0 : index
    %7 = vector.load %arg6[%c0_8, %c0_9] : memref<1x32xf32, #tpu.memory_space<vmem>>, vector<1x32xf32>
    %8 = vector.broadcast %7 : vector<1x32xf32> to vector<16x32xf32>
    %9 = arith.addf %6, %8 : vector<16x32xf32>
    %c0_10 = arith.constant 0 : index
    %c0_11 = arith.constant 0 : index
    %10 = vector.load %arg7[%c0_10, %c0_11] : memref<16x32xf32, #tpu.memory_space<vmem>>, vector<16x32xf32>
    tpu.vector_store %arg7[%c0_10, %c0_11], %9 {strides = array<i32>} : memref<16x32xf32, #tpu.memory_space<vmem>>, vector<16x32xf32>,
    return
  }
  func.func @transform_0(%arg0: i32, %arg1: i32) -> (i32, i32) {
    %c0_i32 = arith.constant 0 : i32
    %c0_i32_0 = arith.constant 0 : i32
    return %arg1, %c0_i32 : i32, i32
  }
  func.func @transform_1(%arg0: i32, %arg1: i32) -> (i32, i32) {
    %c0_i32 = arith.constant 0 : i32
    %c0_i32_0 = arith.constant 0 : i32
    return %arg1, %c0_i32 : i32, i32
  }
  func.func @transform_2(%arg0: i32, %arg1: i32) -> (i32, i32) {
    %c0_i32 = arith.constant 0 : i32
    %c0_i32_0 = arith.constant 0 : i32
    return %c0_i32, %arg0 : i32, i32
  }
  func.func @transform_3(%arg0: i32, %arg1: i32) -> (i32, i32) {
    %c0_i32 = arith.constant 0 : i32
    %c0_i32_0 = arith.constant 0 : i32
    return %c0_i32, %arg0 : i32, i32
  }
  func.func @transform_4(%arg0: i32, %arg1: i32) -> (i32, i32) {
    %c0_i32 = arith.constant 0 : i32
    %c0_i32_0 = arith.constant 0 : i32
    return %c0_i32, %arg0 : i32, i32
  }
  func.func @transform_5(%arg0: i32, %arg1: i32) -> (i32, i32) {
    %c0_i32 = arith.constant 0 : i32
    return %arg1, %arg0 : i32, i32
  }
}

</mosaic_0001>

<llo_original>
// kernel: tpu_custom_call.1
$region0: #{tpu_custom_call.1}
  #allocation0 [shape = 'u32[]', space=smem, size = 0x4, offset = 0x4, fixed_abs, tag = 'smem constant byte address 0x4 - core index']
  #allocation1 [shape = 'u32[144,128]{1,0:T(1,128)}', space=vmem, size = 0x12000, scoped, tag = 'internal scratch']
  %s0 = inlined_call_operand.hbm [shape: f32[16,32], index: 0, kind: input, shape index: {}]
  %s1 = inlined_call_operand.hbm [shape: f32[16,32], index: 1, kind: input, shape index: {}]
  %s2 = inlined_call_operand.hbm [shape: f32[32,32], index: 2, kind: input, shape index: {}]
  %s3 = inlined_call_operand.hbm [shape: f32[32,32], index: 3, kind: input, shape index: {}]
  %s4 = inlined_call_operand.vmem [shape: f32[1,32], index: 4, kind: input, shape index: {}]
  %s5 = inlined_call_operand.hbm [shape: f32[16,32], index: 5, kind: output, shape index: {}]
  %s6 = sld [smem:[#allocation0]]
  $region46: #{tpu_custom_call.1} parent=0
    _
  %s8 = ssub.s32 1, %s6
  %s9 = scalar_select 0, %s8, %s6
  $region1: #{tpu_custom_call.1} parent=0
    #allocation2 [shape = 'u8[8192]{0}', space=vmem, size = 0x2000, scoped, tag = 'input window, operand 0, single buffered']
    #allocation3 [shape = 's32[1]{0}', space=sflag, size = 0x4, scoped, tag = 'scoped memory for tpu_custom_call.1']
    #allocation4 [shape = 's32[1]{0}', space=sflag, size = 0x4, scoped, tag = 'scoped memory for tpu_custom_call.1']
    #allocation5 [shape = 'u8[8192]{0}', space=vmem, size = 0x2000, scoped, tag = 'input window, operand 1, single buffered']
    #allocation6 [shape = 's32[1]{0}', space=sflag, size = 0x4, scoped, tag = 'scoped memory for tpu_custom_call.1']
    #allocation7 [shape = 'u8[16384]{0}', space=vmem, size = 0x4000, scoped, tag = 'input window, operand 2, single buffered']
    #allocation8 [shape = 'u8[16384]{0}', space=vmem, size = 0x4000, scoped, tag = 'input window, operand 3, single buffered']
    #allocation9 [shape = 's32[1]{0}', space=sflag, size = 0x4, scoped, tag = 'scoped memory for tpu_custom_call.1']
    #allocation10 [shape = 'u8[8192]{0}', space=vmem, size = 0x2000, scoped, tag = 'output window, operand 0, single buffered']
    %10 = vsyncpa [#allocation3], 0
    %11 = vsyncpa [#allocation6], 0
    %12 = vsyncpa [#allocation9], 0
    %13 = vsyncpa [#allocation4], 0
    // Predicated region
    $region2: #{tpu_custom_call.1} parent=1 // pred_check
      _
    $region3: #{tpu_custom_call.1} parent=1 // pred_check_branch
      %15 = sbr.rel (0) target = $region5
    $region4: #{tpu_custom_call.1} parent=1 // pred_region
      %s17 = ssub.s32 256, 256
      %18 = vsyncadd [#allocation3], %s17
      %s19 = sshll.u32 [#allocation2], 4
      %s20 = int_to_ptr.vmem [resolvable:$true] %s19
      %25 = dma.hbm_to_vmem [thread:$0]  %s0, 256, %s20, [#allocation3], 128, 128, 8
    $region5: #{tpu_custom_call.1} parent=1 // pred_fallthru
      _
    // Predicated region
    $region6: #{tpu_custom_call.1} parent=1 // pred_check
      _
    $region7: #{tpu_custom_call.1} parent=1 // pred_check_branch
      %27 = sbr.rel (0) target = $region9
    $region8: #{tpu_custom_call.1} parent=1 // pred_region
      %s29 = ssub.s32 256, 256
      %30 = vsyncadd [#allocation6], %s29
      %s31 = sshll.u32 [#allocation5], 4
      %s32 = int_to_ptr.vmem [resolvable:$true] %s31
      %37 = dma.hbm_to_vmem [thread:$0]  %s1, 256, %s32, [#allocation6], 128, 128, 8
    $region9: #{tpu_custom_call.1} parent=1 // pred_fallthru
      _
    // Predicated region
    $region10: #{tpu_custom_call.1} parent=1 // pred_check
      _
    $region11: #{tpu_custom_call.1} parent=1 // pred_check_branch
      %39 = sbr.rel (0) target = $region13
    $region12: #{tpu_custom_call.1} parent=1 // pred_region
      %s41 = ssub.s32 512, 512
      %42 = vsyncadd [#allocation6], %s41
      %s43 = sshll.u32 [#allocation7], 4
      %s44 = int_to_ptr.vmem [resolvable:$true] %s43
      %49 = dma.hbm_to_vmem [thread:$0]  %s2, 512, %s44, [#allocation6], 128, 128, 8
    $region13: #{tpu_custom_call.1} parent=1 // pred_fallthru
      _
    // Predicated region
    $region14: #{tpu_custom_call.1} parent=1 // pred_check
      _
    $region15: #{tpu_custom_call.1} parent=1 // pred_check_branch
      %51 = sbr.rel (0) target = $region17
    $region16: #{tpu_custom_call.1} parent=1 // pred_region
      %s53 = ssub.s32 512, 512
      %54 = vsyncadd [#allocation9], %s53
      %s55 = sshll.u32 [#allocation8], 4
      %s56 = int_to_ptr.vmem [resolvable:$true] %s55
      %61 = dma.hbm_to_vmem [thread:$0]  %s3, 512, %s56, [#allocation9], 128, 128, 8
    $region17: #{tpu_custom_call.1} parent=1 // pred_fallthru
      _
    // Predicated region
    $region18: #{tpu_custom_call.1} parent=1 // pred_check
      _
    $region19: #{tpu_custom_call.1} parent=1 // pred_check_branch
      %63 = sbr.rel (0) target = $region21
    $region20: #{tpu_custom_call.1} parent=1 // pred_region
      _
    $region21: #{tpu_custom_call.1} parent=1 // pred_fallthru
      _
    // Predicated region
    $region22: #{tpu_custom_call.1} parent=1 // pred_check
      _
    $region23: #{tpu_custom_call.1} parent=1 // pred_check_branch
      %65 = sbr.rel (0) target = $region25
    $region24: #{tpu_custom_call.1} parent=1 // pred_region
      %66 = dma.done [#allocation3], 256
    $region25: #{tpu_custom_call.1} parent=1 // pred_fallthru
      _
    // Predicated region
    $region26: #{tpu_custom_call.1} parent=1 // pred_check
      _
    $region27: #{tpu_custom_call.1} parent=1 // pred_check_branch
      %68 = sbr.rel (0) target = $region29
    $region28: #{tpu_custom_call.1} parent=1 // pred_region
      %69 = dma.done [#allocation6], 256
    $region29: #{tpu_custom_call.1} parent=1 // pred_fallthru
      _
    // Predicated region
    $region30: #{tpu_custom_call.1} parent=1 // pred_check
      _
    $region31: #{tpu_custom_call.1} parent=1 // pred_check_branch
      %71 = sbr.rel (0) target = $region33
    $region32: #{tpu_custom_call.1} parent=1 // pred_region
      %72 = dma.done [#allocation6], 512
    $region33: #{tpu_custom_call.1} parent=1 // pred_fallthru
      _
    // Predicated region
    $region34: #{tpu_custom_call.1} parent=1 // pred_check
      _
    $region35: #{tpu_custom_call.1} parent=1 // pred_check_branch
      %74 = sbr.rel (0) target = $region37
    $region36: #{tpu_custom_call.1} parent=1 // pred_region
      %75 = dma.done [#allocation9], 512
    $region37: #{tpu_custom_call.1} parent=1 // pred_fallthru
      _
    %v76 = vld [vmem:[#allocation2] sm:$0xff]
    %v77 = vld [vmem:[#allocation2 + $0x8] sm:$0xff]
    %v78 = vld [vmem:[#allocation7] sm:$0xff]
    %v79 = vld [vmem:[#allocation7 + $0x8] sm:$0xff]
    %v80 = vld [vmem:[#allocation7 + $0x10] sm:$0xff]
    %v81 = vld [vmem:[#allocation7 + $0x18] sm:$0xff]
    %v82 = vld [vmem:[#allocation5] sm:$0xff]
    %v83 = vld [vmem:[#allocation5 + $0x8] sm:$0xff]
    %v84 = vld [vmem:[#allocation8] sm:$0xff]
    %v85 = vld [vmem:[#allocation8 + $0x8] sm:$0xff]
    %v86 = vld [vmem:[#allocation8 + $0x10] sm:$0xff]
    %v87 = vld [vmem:[#allocation8 + $0x18] sm:$0xff]
    %vm88 = vcmask 261120
    %v90 = vsel %vm88, %v82, 0
    %v93 = vsel %vm88, %v83, 0
    %95 = vmatprep.subr.mxu0 0.0
    %96 = vmatpush1.msra.mxu0 %v84
    %97 = vmatprep.subr.mxu0 0.0
    %98 = vmatpush1.msra.mxu0 %v85
    %99 = vmatprep.subr.mxu0 0.0
    %100 = vmatpush1.msra.mxu0 %v86
    %101 = vmatprep.subr.mxu0 0.0
    %102 = vmatpush1.msra.mxu0 %v87
    %103 = vmatprep.subr.mxu0 0.0
    %104 = vmatpush1.msra.mxu0 0.0
    %105 = vmatprep.subr.mxu0 0.0
    %106 = vmatpush1.msra.mxu0 0.0
    %107 = vmatprep.subr.mxu0 0.0
    %108 = vmatpush1.msra.mxu0 0.0
    %109 = vmatprep.subr.mxu0 0.0
    %110 = vmatpush1.msra.mxu0 0.0
    %111 = vmatprep.subr.mxu0 0.0
    %112 = vmatpush1.msra.mxu0 0.0
    %113 = vmatprep.subr.mxu0 0.0
    %114 = vmatpush1.msra.mxu0 0.0
    %115 = vmatprep.subr.mxu0 0.0
    %116 = vmatpush1.msra.mxu0 0.0
    %117 = vmatprep.subr.mxu0 0.0
    %118 = vmatpush1.msra.mxu0 0.0
    %119 = vmatprep.subr.mxu0 0.0
    %120 = vmatpush1.msra.mxu0 0.0
    %121 = vmatprep.subr.mxu0 0.0
    %122 = vmatpush1.msra.mxu0 0.0
    %123 = vmatprep.subr.mxu0 0.0
    %124 = vmatpush1.msra.mxu0 0.0
    %125 = vmatprep.subr.mxu0 0.0
    %126 = vmatpush1.msra.mxu0 0.0
    %127 = vmatprep.subr.mxu0 0.0
    %128 = vmatpush1.msra.mxu0 0.0
    %129 = vmatprep.subr.mxu0 0.0
    %130 = vmatpush1.msra.mxu0 0.0
    %131 = vmatprep.subr.mxu0 0.0
    %132 = vmatpush1.msra.mxu0 0.0
    %133 = vmatprep.subr.mxu0 0.0
    %134 = vmatpush1.msra.mxu0 0.0
    %135 = vmatprep.subr.mxu0 0.0
    %136 = vmatpush1.msra.mxu0 0.0
    %137 = vmatprep.subr.mxu0 0.0
    %138 = vmatpush1.msra.mxu0 0.0
    %139 = vmatprep.subr.mxu0 0.0
    %140 = vmatpush1.msra.mxu0 0.0
    %141 = vmatprep.subr.mxu0 0.0
    %142 = vmatpush1.msra.mxu0 0.0
    %143 = vmatprep.subr.mxu0 0.0
    %144 = vmatpush1.msra.mxu0 0.0
    %145 = vmatprep.subr.mxu0 0.0
    %146 = vmatpush1.msra.mxu0 0.0
    %147 = vmatprep.subr.mxu0 0.0
    %148 = vmatpush1.msra.mxu0 0.0
    %149 = vmatprep.subr.mxu0 0.0
    %150 = vmatpush1.msra.mxu0 0.0
    %151 = vmatprep.subr.mxu0 0.0
    %152 = vmatpush1.msra.mxu0 0.0
    %153 = vmatprep.subr.mxu0 0.0
    %154 = vmatpush1.msra.mxu0 0.0
    %155 = vmatprep.subr.mxu0 0.0
    %156 = vmatpush1.msra.mxu0 0.0
    %157 = vmatprep.subr.mxu0 0.0
    %158 = vmatpush1.msra.mxu0 0.0
    %159 = vmatprep.mubr.f32.mxu0 0.0
    %160 = vmatmul.mubr.f32.gmra.mrb[0].mxu0 %v90
    %v161 = vpop.f32.mrb[0].mxu0
    %v162 = vadd.f32 0.0, %v161
    %v163 = vpop.f32.mrb[0].mxu0
    %164 = vmatprep.mubr.f32.mxu0 0.0
    %165 = vmatmul.mubr.f32.gmra.mrb[0].mxu0 %v93
    %v166 = vpop.f32.mrb[0].mxu0
    %v167 = vadd.f32 0.0, %v166
    %v168 = vpop.f32.mrb[0].mxu0
    %169 = vdwg.mxu0
    %v171 = vsel %vm88, %v76, 0
    %v174 = vsel %vm88, %v77, 0
    %176 = vmatprep.subr.mxu0 0.0
    %177 = vmatpush1.msra.mxu0 %v78
    %178 = vmatprep.subr.mxu0 0.0
    %179 = vmatpush1.msra.mxu0 %v79
    %180 = vmatprep.subr.mxu0 0.0
    %181 = vmatpush1.msra.mxu0 %v80
    %182 = vmatprep.subr.mxu0 0.0
    %183 = vmatpush1.msra.mxu0 %v81
    %184 = vmatprep.subr.mxu0 0.0
    %185 = vmatpush1.msra.mxu0 0.0
    %186 = vmatprep.subr.mxu0 0.0
    %187 = vmatpush1.msra.mxu0 0.0
    %188 = vmatprep.subr.mxu0 0.0
    %189 = vmatpush1.msra.mxu0 0.0
    %190 = vmatprep.subr.mxu0 0.0
    %191 = vmatpush1.msra.mxu0 0.0
    %192 = vmatprep.subr.mxu0 0.0
    %193 = vmatpush1.msra.mxu0 0.0
    %194 = vmatprep.subr.mxu0 0.0
    %195 = vmatpush1.msra.mxu0 0.0
    %196 = vmatprep.subr.mxu0 0.0
    %197 = vmatpush1.msra.mxu0 0.0
    %198 = vmatprep.subr.mxu0 0.0
    %199 = vmatpush1.msra.mxu0 0.0
    %200 = vmatprep.subr.mxu0 0.0
    %201 = vmatpush1.msra.mxu0 0.0
    %202 = vmatprep.subr.mxu0 0.0
    %203 = vmatpush1.msra.mxu0 0.0
    %204 = vmatprep.subr.mxu0 0.0
    %205 = vmatpush1.msra.mxu0 0.0
    %206 = vmatprep.subr.mxu0 0.0
    %207 = vmatpush1.msra.mxu0 0.0
    %208 = vmatprep.subr.mxu0 0.0
    %209 = vmatpush1.msra.mxu0 0.0
    %210 = vmatprep.subr.mxu0 0.0
    %211 = vmatpush1.msra.mxu0 0.0
    %212 = vmatprep.subr.mxu0 0.0
    %213 = vmatpush1.msra.mxu0 0.0
    %214 = vmatprep.subr.mxu0 0.0
    %215 = vmatpush1.msra.mxu0 0.0
    %216 = vmatprep.subr.mxu0 0.0
    %217 = vmatpush1.msra.mxu0 0.0
    %218 = vmatprep.subr.mxu0 0.0
    %219 = vmatpush1.msra.mxu0 0.0
    %220 = vmatprep.subr.mxu0 0.0
    %221 = vmatpush1.msra.mxu0 0.0
    %222 = vmatprep.subr.mxu0 0.0
    %223 = vmatpush1.msra.mxu0 0.0
    %224 = vmatprep.subr.mxu0 0.0
    %225 = vmatpush1.msra.mxu0 0.0
    %226 = vmatprep.subr.mxu0 0.0
    %227 = vmatpush1.msra.mxu0 0.0
    %228 = vmatprep.subr.mxu0 0.0
    %229 = vmatpush1.msra.mxu0 0.0
    %230 = vmatprep.subr.mxu0 0.0
    %231 = vmatpush1.msra.mxu0 0.0
    %232 = vmatprep.subr.mxu0 0.0
    %233 = vmatpush1.msra.mxu0 0.0
    %234 = vmatprep.subr.mxu0 0.0
    %235 = vmatpush1.msra.mxu0 0.0
    %236 = vmatprep.subr.mxu0 0.0
    %237 = vmatpush1.msra.mxu0 0.0
    %238 = vmatprep.subr.mxu0 0.0
    %239 = vmatpush1.msra.mxu0 0.0
    %240 = vmatprep.mubr.f32.mxu0 0.0
    %241 = vmatmul.mubr.f32.gmra.mrb[0].mxu0 %v171
    %v242 = vpop.f32.mrb[0].mxu0
    %v243 = vadd.f32 %v162, %v242
    %v244 = vpop.f32.mrb[0].mxu0
    %245 = vmatprep.mubr.f32.mxu0 0.0
    %246 = vmatmul.mubr.f32.gmra.mrb[0].mxu0 %v174
    %v247 = vpop.f32.mrb[0].mxu0
    %v248 = vadd.f32 %v167, %v247
    %v249 = vpop.f32.mrb[0].mxu0
    %250 = vdwg.mxu0
    %v251 = vld [vmem:[%s4] sm:$0x1]
    %v253 = vlaneseq
    %v254 = vshrl.u32 %v253, 7
    %v255 = vsub.s32 0, %v254
    %v256 = vrot.slane %v251, %v255
    %v258 = vadd.f32 %v243, %v256
    %v259 = vadd.f32 %v248, %v256
    %260 = vst.msk [vmem:[#allocation10] sm:$0xff] %vm88, %v258
    %261 = vst.msk [vmem:[#allocation10 + $0x8] sm:$0xff] %vm88, %v259
    // Predicated region
    $region38: #{tpu_custom_call.1} parent=1 // pred_check
      _
    $region39: #{tpu_custom_call.1} parent=1 // pred_check_branch
      %263 = sbr.rel (0) target = $region41
    $region40: #{tpu_custom_call.1} parent=1 // pred_region
      %s265 = ssub.s32 256, 256
      %266 = vsyncadd [#allocation4], %s265
      %s267 = sshll.u32 [#allocation10], 4
      %s268 = int_to_ptr.vmem [resolvable:$true] %s267
      %273 = dma.vmem_to_hbm [thread:$0]  %s268, 256, %s5, [#allocation4], 128, 128, 8
    $region41: #{tpu_custom_call.1} parent=1 // pred_fallthru
      _
    // Predicated region
    $region42: #{tpu_custom_call.1} parent=1 // pred_check
      _
    $region43: #{tpu_custom_call.1} parent=1 // pred_check_branch
      %275 = sbr.rel (0) target = $region45
    $region44: #{tpu_custom_call.1} parent=1 // pred_region
      %276 = dma.done [#allocation4], 256
    $region45: #{tpu_custom_call.1} parent=1 // pred_fallthru
      _
    %277 = vsyncpa [#allocation3], 1
    %278 = vsyncpa [#allocation6], 1
    %279 = vsyncpa [#allocation9], 1
    %280 = vsyncpa [#allocation4], 1

</llo_original>
